<compile_context>
chip_gen: v6e
topology: v6e:2x2x1
jax: 0.10.0
libtpu: 0.0.40
codegen_flags: <defaults>
</compile_context>

<pallas_src>
import functools

import jax
import jax.numpy as jnp
from jax.experimental import pallas as pl
from jax.experimental.pallas import tpu as pltpu


MASK_BIAS = -1e30  # additive bias for non-edges


# ----------------------------------------------------------------------------
# Pallas kernels
# ----------------------------------------------------------------------------
def _proj_kernel(x_ref, wall_ref, wsrc_ref, wdst_ref, z_ref, el_ref, er_ref):
    """Row tile of the fused per-layer projection (all heads in one MXU pass).

      x_ref    : (TP, F)      f32 input rows
      wall_ref : (F, H*Fo)    bf16, all heads' projections, heads on lanes
      wsrc_ref : (F, H)       bf16, column h = W_h @ a_src_h
      wdst_ref : (F, H)       bf16, column h = W_h @ a_dst_h
      z_ref    : (TP, H*Fo)   bf16 projected features (lane-dense)
      el_ref   : (TP, H)      f32 source attention scores
      er_ref   : (TP, H)      f32 destination attention scores
    """
    xb = x_ref[...].astype(jnp.bfloat16)
    z_ref[...] = jnp.dot(xb, wall_ref[...],
                         preferred_element_type=jnp.float32).astype(z_ref.dtype)
    el_ref[...] = jnp.dot(xb, wsrc_ref[...], preferred_element_type=jnp.float32)
    er_ref[...] = jnp.dot(xb, wdst_ref[...], preferred_element_type=jnp.float32)


def _attn_kernel(adj_ref, z_ref, elt_ref, er_ref, b_ref, out_ref, *,
                 nheads, fo, negative_slope, apply_elu, apply_log_softmax):
    """One destination-row tile of ALL heads of a GATConv layer.

      adj_ref : (TM, N)     int8 edge indicator (1 if edge j->i else 0)
      z_ref   : (N, H*Fo)   bf16 projected features (VMEM-resident)
      elt_ref : (H, N)      f32 source scores (VMEM-resident)
      er_ref  : (TM, H)     f32 destination scores for this row tile
      b_ref   : (1, H*Fo)   f32 bias (heads stacked on lanes)
      out_ref : (TM, H*Fo)  f32 lane-dense output tile
    """
    edge = adj_ref[...].astype(jnp.float32) != 0.0       # (TM, N) edge mask
    z_all = z_ref[...]                                   # (N, H*Fo) bf16
    elt = elt_ref[...]                                   # (H, N) f32
    er = er_ref[...]                                     # (TM, H) f32
    b = b_ref[...]                                       # (1, H*Fo) f32

    for h in range(nheads):                              # static unroll over heads
        e = er[:, h:h + 1] + elt[h:h + 1, :]             # (TM, N) f32
        e = jnp.where(e > 0, e, negative_slope * e)      # LeakyReLU (f32; v5e-safe)
        e = jnp.where(edge, e, MASK_BIAS)                # mask non-edges
        m = jnp.max(e, axis=1, keepdims=True)
        p = jnp.exp(e - m)                               # (TM, N) f32
        denom = jnp.sum(p, axis=1, keepdims=True)        # (TM, 1) f32
        z_h = z_all[:, h * fo:(h + 1) * fo]              # (N, Fo) bf16
        # bf16 operands into the MXU, f32 accumulation.
        agg = jnp.dot(p.astype(jnp.bfloat16), z_h,
                      preferred_element_type=jnp.float32)        # (TM, Fo)
        # Scale the small (TM, Fo) result instead of dividing the (TM, N) matrix.
        o = agg * pl.reciprocal(denom, approx=False)
        o = o + b[:, h * fo:(h + 1) * fo]
        if apply_elu:
            # Clamp before exp: both select branches are evaluated on TPU.
            o = jnp.where(o > 0, o, jnp.exp(jnp.minimum(o, 0.0)) - 1.0)
        if apply_log_softmax:                            # only used when nheads == 1
            mm = jnp.max(o, axis=1, keepdims=True)
            s = o - mm
            o = s - jnp.log(jnp.sum(jnp.exp(s), axis=1, keepdims=True))
        # Direct lane-slice store: no in-register concatenate of head slabs.
        out_ref[:, h * fo:(h + 1) * fo] = o.astype(out_ref.dtype)


# ----------------------------------------------------------------------------
# Wrappers
# ----------------------------------------------------------------------------
def _round_up(x, m):
    return ((x + m - 1) // m) * m


def _choose_row_tile(n, target=256):
    """Row tile: multiple of 32 (int8/bf16 sublane packing), <= target, and at
    most ~n/2 so the attention grid has >=2 steps (v7x megacore sharding)."""
    if n <= 32:
        return 32
    half = _round_up((n + 1) // 2, 32)
    return max(32, min(target, half))


def gat_layer(x, adj_i8, w, a_src, a_dst, bias, *, tm, apply_elu,
              apply_log_softmax=False, negative_slope=0.2):
    """Multi-head GATConv on the (padded) graph. Returns lane-dense (Np, H*Fo)."""
    np_, f = x.shape
    nheads, _, fo = w.shape
    hfo = nheads * fo
    assert np_ % tm == 0
    assert not (apply_log_softmax and nheads > 1)

    # Head-fused parameters (tiny one-time JAX-level reshapes, outside kernels).
    w_all = jnp.transpose(w, (1, 0, 2)).reshape(f, hfo).astype(jnp.bfloat16)
    wa_src = jnp.einsum("hfo,ho->fh", w, a_src).astype(jnp.bfloat16)   # (F, H)
    wa_dst = jnp.einsum("hfo,ho->fh", w, a_dst).astype(jnp.bfloat16)   # (F, H)
    bias_row = bias.reshape(1, hfo).astype(jnp.float32)

    grid = np_ // tm

    # 1) row-tiled fused projection: one bf16 MXU pass over all heads + scores.
    proj_cost = pl.CostEstimate(
        flops=2 * np_ * f * (hfo + 2 * nheads),
        transcendentals=0,
        bytes_accessed=(np_ * f * 4 + f * (hfo + 2 * nheads) * 2
                        + np_ * hfo * 2 + 2 * np_ * nheads * 4))
    z, el, er = pl.pallas_call(
        _proj_kernel,
        out_shape=(
            jax.ShapeDtypeStruct((np_, hfo), jnp.bfloat16),
            jax.ShapeDtypeStruct((np_, nheads), jnp.float32),
            jax.ShapeDtypeStruct((np_, nheads), jnp.float32),
        ),
        grid_spec=pltpu.PrefetchScalarGridSpec(
            num_scalar_prefetch=0,
            grid=(grid,),
            in_specs=[
                pl.BlockSpec((tm, f), lambda r: (r, 0)),         # x row tile
                pl.BlockSpec((f, hfo), lambda r: (0, 0)),        # W_all (resident)
                pl.BlockSpec((f, nheads), lambda r: (0, 0)),     # W@a_src (resident)
                pl.BlockSpec((f, nheads), lambda r: (0, 0)),     # W@a_dst (resident)
            ],
            out_specs=(
                pl.BlockSpec((tm, hfo), lambda r: (r, 0)),
                pl.BlockSpec((tm, nheads), lambda r: (r, 0)),
                pl.BlockSpec((tm, nheads), lambda r: (r, 0)),
            ),
        ),
        compiler_params=pltpu.CompilerParams(
            dimension_semantics=("parallel",),
            vmem_limit_bytes=48 * 1024 * 1024),
        cost_estimate=proj_cost,
    )(x, w_all, wa_src, wa_dst)

    # Tiny (H, Np) transpose outside the kernels so source scores sit on lanes.
    el_t = el.T

    # 2) row-tiled masked attention + aggregation (+ fused ELU / log_softmax).
    kernel = functools.partial(
        _attn_kernel, nheads=nheads, fo=fo,
        negative_slope=float(negative_slope),
        apply_elu=apply_elu, apply_log_softmax=apply_log_softmax)
    attn_cost = pl.CostEstimate(
        flops=2 * np_ * np_ * nheads * fo + 6 * np_ * np_ * nheads,
        transcendentals=np_ * np_ * nheads,
        bytes_accessed=(np_ * np_ * 1 + np_ * hfo * 2 + np_ * nheads * 8
                        + np_ * hfo * 4))
    return pl.pallas_call(
        kernel,
        out_shape=jax.ShapeDtypeStruct((np_, hfo), jnp.float32),
        grid_spec=pltpu.PrefetchScalarGridSpec(
            num_scalar_prefetch=0,
            grid=(grid,),
            in_specs=[
                pl.BlockSpec((tm, np_), lambda r: (r, 0)),       # int8 adjacency tile
                pl.BlockSpec((np_, hfo), lambda r: (0, 0)),      # z (bf16, resident)
                pl.BlockSpec((nheads, np_), lambda r: (0, 0)),   # el^T (resident)
                pl.BlockSpec((tm, nheads), lambda r: (r, 0)),    # er tile
                pl.BlockSpec((1, hfo), lambda r: (0, 0)),        # bias (resident)
            ],
            out_specs=pl.BlockSpec((tm, hfo), lambda r: (r, 0)),
        ),
        compiler_params=pltpu.CompilerParams(
            dimension_semantics=("parallel",),
            # TODO(synk): for very large graphs on v7x (64 MiB VMEM) shrink tm /
            # this budget; 48 MiB is safe on v5e/v6e/v7x at these working sets.
            vmem_limit_bytes=48 * 1024 * 1024),
        cost_estimate=attn_cost,
    )(adj_i8, z, el_t, er, bias_row)


def init_params(key, nfeat, nhid, nclass, nheads1=4):
    ks = jax.random.split(key, 8)
    s1 = 1.0 / jnp.sqrt(jnp.float32(nfeat))
    s2 = 1.0 / jnp.sqrt(jnp.float32(nheads1 * nhid))
    return {
        "w1": jax.random.normal(ks[0], (nheads1, nfeat, nhid), jnp.float32) * s1,
        "a_src1": jax.random.normal(ks[1], (nheads1, nhid), jnp.float32) * 0.1,
        "a_dst1": jax.random.normal(ks[2], (nheads1, nhid), jnp.float32) * 0.1,
        "b1": jax.random.normal(ks[3], (nheads1, nhid), jnp.float32) * 0.01,
        "w2": jax.random.normal(ks[4], (1, nheads1 * nhid, nclass), jnp.float32) * s2,
        "a_src2": jax.random.normal(ks[5], (1, nclass), jnp.float32) * 0.1,
        "a_dst2": jax.random.normal(ks[6], (1, nclass), jnp.float32) * 0.1,
        "b2": jax.random.normal(ks[7], (1, nclass), jnp.float32) * 0.01,
    }


def gat_forward(params, x, adj):
    n = x.shape[0]
    tm = _choose_row_tile(n)
    np_ = _round_up(n, tm)

    # int8 edge indicator (the only per-grid-step HBM stream, shared by both
    # layers).  Pad rows/cols with zeros (non-edges) so padded nodes never mix
    # into real rows.  NOTE: as in standard GAT, every real node is expected to
    # have at least one in-edge (self-loops in the demo).
    adj_i8 = (adj != 0).astype(jnp.int8)
    if np_ != n:
        x = jnp.pad(x, ((0, np_ - n), (0, 0)))
        adj_i8 = jnp.pad(adj_i8, ((0, np_ - n), (0, np_ - n)))

    # conv1 (4 heads) + ELU, output already lane-dense (Np, 4*nhid): no transpose.
    h1 = gat_layer(x, adj_i8, params["w1"], params["a_src1"], params["a_dst1"],
                   params["b1"], tm=tm, apply_elu=True)
    # conv2 (1 head) with log_softmax fused into the kernel.
    out = gat_layer(h1, adj_i8, params["w2"], params["a_src2"], params["a_dst2"],
                    params["b2"], tm=tm, apply_elu=False, apply_log_softmax=True)
    return out[:n]


# ----------------------------------------------------------------------------
# Pure-JAX f32 reference (for correctness check)
# ----------------------------------------------------------------------------
def _gat_layer_ref(x, adj, w, a_src, a_dst, bias, apply_elu, slope=0.2):
    outs = []
    for h in range(w.shape[0]):
        z = x @ w[h]
        el = z @ a_src[h]                          # (N,) source scores
        er = z @ a_dst[h]                          # (N,) destination scores
        e = er[:, None] + el[None, :]
        e = jnp.where(e > 0, e, slope * e)
        e = jnp.where(adj != 0, e, -1e30)
        alpha = jax.nn.softmax(e, axis=1)
        o = alpha @ z + bias[h]
        if apply_elu:
            o = jnp.where(o > 0, o, jnp.exp(o) - 1.0)
        outs.append(o)
    return jnp.stack(outs, axis=0)


def gat_forward_ref(params, x, adj):
    n = x.shape[0]
    h1 = _gat_layer_ref(x, adj, params["w1"], params["a_src1"], params["a_dst1"],
                        params["b1"], True)
    h1 = jnp.transpose(h1, (1, 0, 2)).reshape(n, -1)
    h2 = _gat_layer_ref(h1, adj, params["w2"], params["a_src2"], params["a_dst2"],
                        params["b2"], False)
    h2 = jnp.transpose(h2, (1, 0, 2)).reshape(n, -1)
    return jax.nn.log_softmax(h2, axis=1)


# ----------------------------------------------------------------------------
if __name__ == "__main__":
    N, NFEAT, NHID, NCLASS = 64, 16, 8, 2

    key = jax.random.PRNGKey(0)
    k_x, k_adj, k_p = jax.random.split(key, 3)

    x = jax.random.normal(k_x, (N, NFEAT), jnp.float32)
    # Random sparse-ish directed graph with self loops (dense adjacency).
    adj = (jax.random.uniform(k_adj, (N, N)) < 0.15).astype(jnp.float32)
    adj = jnp.maximum(adj, jnp.eye(N, dtype=jnp.float32))

    params = init_params(k_p, NFEAT, NHID, NCLASS)

    out = jax.block_until_ready(gat_forward(params, x, adj))
    ref = jax.block_until_ready(gat_forward_ref(params, x, adj))

    assert out.shape == (N, NCLASS)
    assert bool(jnp.all(jnp.isfinite(out)))
    # bf16 MXU paths (projection + p@z aggregation) vs the pure-f32 reference:
    # tolerance is loosened accordingly; structural errors would be O(1).
    assert bool(jnp.allclose(out, ref, atol=5e-2, rtol=5e-2)), "mismatch vs reference"

    print("KERNEL_OK")
</pallas_src>

<mosaic_0001>
module attributes {stable_mosaic.version = 11 : i64} {
  func.func @_proj_kernel(%arg0: i32, %arg1: memref<32x16xf32, #tpu.memory_space<vmem>>, %arg2: memref<16x32xbf16, #tpu.memory_space<vmem>>, %arg3: memref<16x4xbf16, #tpu.memory_space<vmem>>, %arg4: memref<16x4xbf16, #tpu.memory_space<vmem>>, %arg5: memref<32x32xbf16, #tpu.memory_space<vmem>>, %arg6: memref<32x4xf32, #tpu.memory_space<vmem>>, %arg7: memref<32x4xf32, #tpu.memory_space<vmem>>) attributes {dimension_semantics = [#tpu.dimension_semantics<parallel>], iteration_bounds = array<i64: 2>, scalar_prefetch = 0 : i64, scratch_operands = 0 : i64, tpu.core_type = #tpu.core_type<tc>, window_params = [{transform_indices = @transform_0, window_bounds = array<i64: 32, 16>}, {pipeline_mode = #tpu.pipeline_mode<synchronous>, transform_indices = @transform_1, window_bounds = array<i64: 16, 32>}, {pipeline_mode = #tpu.pipeline_mode<synchronous>, transform_indices = @transform_2, window_bounds = array<i64: 16, 4>}, {pipeline_mode = #tpu.pipeline_mode<synchronous>, transform_indices = @transform_3, window_bounds = array<i64: 16, 4>}, {transform_indices = @transform_4, window_bounds = array<i64: 32, 32>}, {transform_indices = @transform_5, window_bounds = array<i64: 32, 4>}, {transform_indices = @transform_6, window_bounds = array<i64: 32, 4>}]} {
    %c0 = arith.constant 0 : index
    %c0_0 = arith.constant 0 : index
    %0 = vector.load %arg1[%c0, %c0_0] : memref<32x16xf32, #tpu.memory_space<vmem>>, vector<32x16xf32>
    %1 = arith.truncf %0 : vector<32x16xf32> to vector<32x16xbf16>
    %c0_1 = arith.constant 0 : index
    %c0_2 = arith.constant 0 : index
    %2 = vector.load %arg2[%c0_1, %c0_2] : memref<16x32xbf16, #tpu.memory_space<vmem>>, vector<16x32xbf16>
    %cst = arith.constant dense<0.000000e+00> : vector<32x32xf32>
    %3 = tpu.matmul %1, %2, %cst {dimension_numbers = #tpu.dot_dimension_numbers<[1], [0], [0], [1], [0, 0, 1, 1], [], []>} : vector<32x16xbf16>, vector<16x32xbf16>, vector<32x32xf32> -> vector<32x32xf32>
    %4 = arith.truncf %3 : vector<32x32xf32> to vector<32x32xbf16>
    %c0_3 = arith.constant 0 : index
    %c0_4 = arith.constant 0 : index
    %5 = vector.load %arg5[%c0_3, %c0_4] : memref<32x32xbf16, #tpu.memory_space<vmem>>, vector<32x32xbf16>
    tpu.vector_store %arg5[%c0_3, %c0_4], %4 {strides = array<i32>} : memref<32x32xbf16, #tpu.memory_space<vmem>>, vector<32x32xbf16>,
    %c0_5 = arith.constant 0 : index
    %c0_6 = arith.constant 0 : index
    %6 = vector.load %arg3[%c0_5, %c0_6] : memref<16x4xbf16, #tpu.memory_space<vmem>>, vector<16x4xbf16>
    %cst_7 = arith.constant dense<0.000000e+00> : vector<32x4xf32>
    %7 = tpu.matmul %1, %6, %cst_7 {dimension_numbers = #tpu.dot_dimension_numbers<[1], [0], [0], [1], [0, 0, 1, 1], [], []>} : vector<32x16xbf16>, vector<16x4xbf16>, vector<32x4xf32> -> vector<32x4xf32>
    %c0_8 = arith.constant 0 : index
    %c0_9 = arith.constant 0 : index
    %8 = vector.load %arg6[%c0_8, %c0_9] : memref<32x4xf32, #tpu.memory_space<vmem>>, vector<32x4xf32>
    tpu.vector_store %arg6[%c0_8, %c0_9], %7 {strides = array<i32>} : memref<32x4xf32, #tpu.memory_space<vmem>>, vector<32x4xf32>,
    %c0_10 = arith.constant 0 : index
    %c0_11 = arith.constant 0 : index
    %9 = vector.load %arg4[%c0_10, %c0_11] : memref<16x4xbf16, #tpu.memory_space<vmem>>, vector<16x4xbf16>
    %cst_12 = arith.constant dense<0.000000e+00> : vector<32x4xf32>
    %10 = tpu.matmul %1, %9, %cst_12 {dimension_numbers = #tpu.dot_dimension_numbers<[1], [0], [0], [1], [0, 0, 1, 1], [], []>} : vector<32x16xbf16>, vector<16x4xbf16>, vector<32x4xf32> -> vector<32x4xf32>
    %c0_13 = arith.constant 0 : index
    %c0_14 = arith.constant 0 : index
    %11 = vector.load %arg7[%c0_13, %c0_14] : memref<32x4xf32, #tpu.memory_space<vmem>>, vector<32x4xf32>
    tpu.vector_store %arg7[%c0_13, %c0_14], %10 {strides = array<i32>} : memref<32x4xf32, #tpu.memory_space<vmem>>, vector<32x4xf32>,
    return
  }
  func.func @transform_0(%arg0: i32) -> (i32, i32) {
    %c0_i32 = arith.constant 0 : i32
    %c0_i32_0 = arith.constant 0 : i32
    return %arg0, %c0_i32 : i32, i32
  }
  func.func @transform_1(%arg0: i32) -> (i32, i32) {
    %c0_i32 = arith.constant 0 : i32
    %c0_i32_0 = arith.constant 0 : i32
    %c0_i32_1 = arith.constant 0 : i32
    return %c0_i32, %c0_i32_0 : i32, i32
  }
  func.func @transform_2(%arg0: i32) -> (i32, i32) {
    %c0_i32 = arith.constant 0 : i32
    %c0_i32_0 = arith.constant 0 : i32
    %c0_i32_1 = arith.constant 0 : i32
    return %c0_i32, %c0_i32_0 : i32, i32
  }
  func.func @transform_3(%arg0: i32) -> (i32, i32) {
    %c0_i32 = arith.constant 0 : i32
    %c0_i32_0 = arith.constant 0 : i32
    %c0_i32_1 = arith.constant 0 : i32
    return %c0_i32, %c0_i32_0 : i32, i32
  }
  func.func @transform_4(%arg0: i32) -> (i32, i32) {
    %c0_i32 = arith.constant 0 : i32
    %c0_i32_0 = arith.constant 0 : i32
    return %arg0, %c0_i32 : i32, i32
  }
  func.func @transform_5(%arg0: i32) -> (i32, i32) {
    %c0_i32 = arith.constant 0 : i32
    %c0_i32_0 = arith.constant 0 : i32
    return %arg0, %c0_i32 : i32, i32
  }
  func.func @transform_6(%arg0: i32) -> (i32, i32) {
    %c0_i32 = arith.constant 0 : i32
    %c0_i32_0 = arith.constant 0 : i32
    return %arg0, %c0_i32 : i32, i32
  }
}

</mosaic_0001>

<llo_original>
// kernel: tpu_custom_call.1
$region0: #{tpu_custom_call.1}
  #allocation0 [shape = 'u32[]', space=smem, size = 0x4, offset = 0x4, fixed_abs, tag = 'smem constant byte address 0x4 - core index']
  #allocation1 [shape = 'u32[144,128]{1,0:T(1,128)}', space=vmem, size = 0x12000, scoped, tag = 'internal scratch']
  %s0 = inlined_call_operand.vmem [shape: f32[64,16], index: 0, kind: input, shape index: {}]
  %s1 = inlined_call_operand.vmem [shape: bf16[16,32], index: 1, kind: input, shape index: {}]
  %s2 = inlined_call_operand.vmem [shape: bf16[16,4], index: 2, kind: input, shape index: {}]
  %s3 = inlined_call_operand.vmem [shape: bf16[16,4], index: 3, kind: input, shape index: {}]
  %s4 = inlined_call_operand.vmem [shape: bf16[64,32], index: 4, kind: output, shape index: {0}]
  %s5 = inlined_call_operand.vmem [shape: f32[64,4], index: 5, kind: output, shape index: {1}]
  %s6 = inlined_call_operand.vmem [shape: f32[64,4], index: 6, kind: output, shape index: {2}]
  %7 = xla_tuple %s4, %s5, %s6
  %s8 = sld [smem:[#allocation0]]
  $region65: #{tpu_custom_call.1} parent=0
    _
  %s10 = ssub.s32 1, %s8
  %s11 = scalar_select 0, %s10, %s8
  loop: start=0, step=1, limit=4
  $region2: #{tpu_custom_call.1} parent=0 // loop_pre_header
    _
  $region3: #{tpu_custom_call.1} parent=0 // loop_header
    %s13 = sphi 0, %s17
    %p14 = scmp.ge.s32.totalorder %s13, 4
    %s23 = sphi 0, %s25
    %s26 = sphi 0, %s23
    %s27 = sphi 0, %s26
    %s43 = sphi 0, %s27
    %s47 = sphi 0, %s47
    %s49 = sphi 0, %s47
    %s50 = sphi 0, %s49
    %s64 = sphi 0, %s50
    %s68 = sphi 0, %s68
    %s70 = sphi 0, %s68
    %s71 = sphi 0, %s70
    %s85 = sphi 0, %s71
    %s89 = sphi 0, %s89
    %s91 = sphi 0, %s89
    %s92 = sphi 0, %s91
    %s106 = sphi 0, %s92
    %s112 = sphi 0, %s114
    %s115 = sphi 0, %s112
    %s116 = sphi 0, %s115
    %s132 = sphi 0, %s116
    %s138 = sphi 0, %s140
    %s141 = sphi 0, %s138
    %s142 = sphi 0, %s141
    %s158 = sphi 0, %s142
    %s164 = sphi 0, %s166
    %s167 = sphi 0, %s164
    %s168 = sphi 0, %s167
    %s184 = sphi 0, %s168
  $region4: #{tpu_custom_call.1} parent=0 // loop_header_branch
    %16 = sbr.rel (%p14) target = $region8
  $region5: #{tpu_custom_call.1} parent=0 // loop_body
    %s18 = ssub.s32 %s13, 1
    %s19 = ssub.s32 %s13, 2
    %s20 = sadd.s32 %s13, 1
    %s21 = ssub.s32 %s13, %s20
    %p22 = scmp.eq.s32.totalorder %s21, 0
    %s24 = sadd.s32 %s23, 1
    %s25 = scalar_select %p22, %s23, %s24
    %p28 = pneg %p22
    %p29 = scmp.eq.s32.totalorder %s13, 1
    %p30 = por %p28, %p29
    %p31 = scmp.ne.s32.totalorder %s23, %s26
    %p32 = scmp.eq.s32.totalorder %s13, 0
    %p33 = por %p31, %p32
    %p34 = scmp.ne.s32.totalorder %s23, %s26
    %p35 = scmp.eq.s32.totalorder %s18, 1
    %p36 = por %p34, %p35
    %p37 = scmp.ne.s32.totalorder %s26, %s27
    %p38 = scmp.eq.s32.totalorder %s18, 0
    %p39 = por %p37, %p38
    %p40 = scmp.ne.s32.totalorder %s26, %s27
    %p41 = scmp.eq.s32.totalorder %s19, 1
    %p42 = por %p40, %p41
    %p44 = scmp.ne.s32.totalorder %s27, %s43
    %p45 = scmp.eq.s32.totalorder %s19, 0
    %p46 = por %p44, %p45
    %s48 = sadd.s32 %s47, 1
    %p51 = scmp.eq.s32.totalorder %s13, 1
    %p52 = scmp.ne.s32.totalorder %s47, %s49
    %p53 = scmp.eq.s32.totalorder %s13, 0
    %p54 = por %p52, %p53
    %p55 = scmp.ne.s32.totalorder %s47, %s49
    %p56 = scmp.eq.s32.totalorder %s18, 1
    %p57 = por %p55, %p56
    %p58 = scmp.ne.s32.totalorder %s49, %s50
    %p59 = scmp.eq.s32.totalorder %s18, 0
    %p60 = por %p58, %p59
    %p61 = scmp.ne.s32.totalorder %s49, %s50
    %p62 = scmp.eq.s32.totalorder %s19, 1
    %p63 = por %p61, %p62
    %p65 = scmp.ne.s32.totalorder %s50, %s64
    %p66 = scmp.eq.s32.totalorder %s19, 0
    %p67 = por %p65, %p66
    %s69 = sadd.s32 %s68, 1
    %p72 = scmp.eq.s32.totalorder %s13, 1
    %p73 = scmp.ne.s32.totalorder %s68, %s70
    %p74 = scmp.eq.s32.totalorder %s13, 0
    %p75 = por %p73, %p74
    %p76 = scmp.ne.s32.totalorder %s68, %s70
    %p77 = scmp.eq.s32.totalorder %s18, 1
    %p78 = por %p76, %p77
    %p79 = scmp.ne.s32.totalorder %s70, %s71
    %p80 = scmp.eq.s32.totalorder %s18, 0
    %p81 = por %p79, %p80
    %p82 = scmp.ne.s32.totalorder %s70, %s71
    %p83 = scmp.eq.s32.totalorder %s19, 1
    %p84 = por %p82, %p83
    %p86 = scmp.ne.s32.totalorder %s71, %s85
    %p87 = scmp.eq.s32.totalorder %s19, 0
    %p88 = por %p86, %p87
    %s90 = sadd.s32 %s89, 1
    %p93 = scmp.eq.s32.totalorder %s13, 1
    %p94 = scmp.ne.s32.totalorder %s89, %s91
    %p95 = scmp.eq.s32.totalorder %s13, 0
    %p96 = por %p94, %p95
    %p97 = scmp.ne.s32.totalorder %s89, %s91
    %p98 = scmp.eq.s32.totalorder %s18, 1
    %p99 = por %p97, %p98
    %p100 = scmp.ne.s32.totalorder %s91, %s92
    %p101 = scmp.eq.s32.totalorder %s18, 0
    %p102 = por %p100, %p101
    %p103 = scmp.ne.s32.totalorder %s91, %s92
    %p104 = scmp.eq.s32.totalorder %s19, 1
    %p105 = por %p103, %p104
    %p107 = scmp.ne.s32.totalorder %s92, %s106
    %p108 = scmp.eq.s32.totalorder %s19, 0
    %p109 = por %p107, %p108
    %s110 = ssub.s32 %s13, %s20
    %p111 = scmp.eq.s32.totalorder %s110, 0
    %s113 = sadd.s32 %s112, 1
    %s114 = scalar_select %p111, %s112, %s113
    %p117 = pneg %p111
    %p118 = scmp.eq.s32.totalorder %s13, 1
    %p119 = por %p117, %p118
    %p120 = scmp.ne.s32.totalorder %s112, %s115
    %p121 = scmp.eq.s32.totalorder %s13, 0
    %p122 = por %p120, %p121
    %p123 = scmp.ne.s32.totalorder %s112, %s115
    %p124 = scmp.eq.s32.totalorder %s18, 1
    %p125 = por %p123, %p124
    %p126 = scmp.ne.s32.totalorder %s115, %s116
    %p127 = scmp.eq.s32.totalorder %s18, 0
    %p128 = por %p126, %p127
    %p129 = scmp.ne.s32.totalorder %s115, %s116
    %p130 = scmp.eq.s32.totalorder %s19, 1
    %p131 = por %p129, %p130
    %p133 = scmp.ne.s32.totalorder %s116, %s132
    %p134 = scmp.eq.s32.totalorder %s19, 0
    %p135 = por %p133, %p134
    %s136 = ssub.s32 %s13, %s20
    %p137 = scmp.eq.s32.totalorder %s136, 0
    %s139 = sadd.s32 %s138, 1
    %s140 = scalar_select %p137, %s138, %s139
    %p143 = pneg %p137
    %p144 = scmp.eq.s32.totalorder %s13, 1
    %p145 = por %p143, %p144
    %p146 = scmp.ne.s32.totalorder %s138, %s141
    %p147 = scmp.eq.s32.totalorder %s13, 0
    %p148 = por %p146, %p147
    %p149 = scmp.ne.s32.totalorder %s138, %s141
    %p150 = scmp.eq.s32.totalorder %s18, 1
    %p151 = por %p149, %p150
    %p152 = scmp.ne.s32.totalorder %s141, %s142
    %p153 = scmp.eq.s32.totalorder %s18, 0
    %p154 = por %p152, %p153
    %p155 = scmp.ne.s32.totalorder %s141, %s142
    %p156 = scmp.eq.s32.totalorder %s19, 1
    %p157 = por %p155, %p156
    %p159 = scmp.ne.s32.totalorder %s142, %s158
    %p160 = scmp.eq.s32.totalorder %s19, 0
    %p161 = por %p159, %p160
    %s162 = ssub.s32 %s13, %s20
    %p163 = scmp.eq.s32.totalorder %s162, 0
    %s165 = sadd.s32 %s164, 1
    %s166 = scalar_select %p163, %s164, %s165
    %p169 = pneg %p163
    %p170 = scmp.eq.s32.totalorder %s13, 1
    %p171 = por %p169, %p170
    %p172 = scmp.ne.s32.totalorder %s164, %s167
    %p173 = scmp.eq.s32.totalorder %s13, 0
    %p174 = por %p172, %p173
    %p175 = scmp.ne.s32.totalorder %s164, %s167
    %p176 = scmp.eq.s32.totalorder %s18, 1
    %p177 = por %p175, %p176
    %p178 = scmp.ne.s32.totalorder %s167, %s168
    %p179 = scmp.eq.s32.totalorder %s18, 0
    %p180 = por %p178, %p179
    %p181 = scmp.ne.s32.totalorder %s167, %s168
    %p182 = scmp.eq.s32.totalorder %s19, 1
    %p183 = por %p181, %p182
    %p185 = scmp.ne.s32.totalorder %s168, %s184
    %p186 = scmp.eq.s32.totalorder %s19, 0
    %p187 = por %p185, %p186
    %p188 = scmp.le.s32.totalorder 1, %s13
    %p189 = scmp.lt.s32.totalorder %s13, 3
    %p190 = pnand %p188, %p189
    %p191 = pneg %p190
    // Predicated region
    $region9: #{tpu_custom_call.1} parent=5 // pred_check
      _
    $region10: #{tpu_custom_call.1} parent=5 // pred_check_branch
      %193 = sbr.rel (%p190) target = $region12
    $region11: #{tpu_custom_call.1} parent=5 // pred_region
      %s194 = ssub.s32 %s13, 1
      // Predicated region
      $region13: #{tpu_custom_call.1} parent=11 // pred_check
        %p195 = pneg %p60
      $region14: #{tpu_custom_call.1} parent=11 // pred_check_branch
        %197 = sbr.rel (%p195) target = $region16
      $region15: #{tpu_custom_call.1} parent=11 // pred_region
        _
      $region16: #{tpu_custom_call.1} parent=11 // pred_fallthru
        _
      // Predicated region
      $region17: #{tpu_custom_call.1} parent=11 // pred_check
        %p198 = pneg %p81
      $region18: #{tpu_custom_call.1} parent=11 // pred_check_branch
        %200 = sbr.rel (%p198) target = $region20
      $region19: #{tpu_custom_call.1} parent=11 // pred_region
        _
      $region20: #{tpu_custom_call.1} parent=11 // pred_fallthru
        _
      // Predicated region
      $region21: #{tpu_custom_call.1} parent=11 // pred_check
        %p201 = pneg %p102
      $region22: #{tpu_custom_call.1} parent=11 // pred_check_branch
        %203 = sbr.rel (%p201) target = $region24
      $region23: #{tpu_custom_call.1} parent=11 // pred_region
        _
      $region24: #{tpu_custom_call.1} parent=11 // pred_fallthru
        _
    $region12: #{tpu_custom_call.1} parent=5 // pred_fallthru
      _
    %p204 = scmp.lt.s32.totalorder %s13, 2
    // Predicated region
    $region25: #{tpu_custom_call.1} parent=5 // pred_check
      %p205 = pneg %p204
    $region26: #{tpu_custom_call.1} parent=5 // pred_check_branch
      %207 = sbr.rel (%p205) target = $region28
    $region27: #{tpu_custom_call.1} parent=5 // pred_region
      // Predicated region
      $region29: #{tpu_custom_call.1} parent=27 // pred_check
        %p208 = pneg %p33
      $region30: #{tpu_custom_call.1} parent=27 // pred_check_branch
        %210 = sbr.rel (%p208) target = $region32
      $region31: #{tpu_custom_call.1} parent=27 // pred_region
        %s211 = smul.u32 4, %s13
        %p212 = scmp.lt.s32.totalorder %s211, 7
        %s213 = scalar_select %p212, %s211, 7
        %s214 = smul.addr %s213, 8
        %s215 = scalar_lea.vmem %s0, %s214
        %s216 = smul.u32 4, %s13
      $region32: #{tpu_custom_call.1} parent=27 // pred_fallthru
        _
    $region28: #{tpu_custom_call.1} parent=5 // pred_fallthru
      _
    %p217 = scmp.le.s32.totalorder 1, %s13
    %p218 = scmp.lt.s32.totalorder %s13, 3
    %p219 = pnand %p217, %p218
    %p220 = pneg %p219
    // Predicated region
    $region33: #{tpu_custom_call.1} parent=5 // pred_check
      _
    $region34: #{tpu_custom_call.1} parent=5 // pred_check_branch
      %222 = sbr.rel (%p219) target = $region36
    $region35: #{tpu_custom_call.1} parent=5 // pred_region
      %s223 = ssub.s32 %s13, 1
      %s224 = smul.u32 4, %s18
      %p225 = scmp.lt.s32.totalorder %s224, 7
      %s226 = scalar_select %p225, %s224, 7
      %s227 = smul.addr %s226, 8
      %s228 = scalar_lea.vmem %s0, %s227
      %p229 = pneg %p39
      %p230 = pneg %p36
      %p231 = pneg %p60
      %p232 = pneg %p57
      %p233 = pneg %p81
      %p234 = pneg %p78
      %p235 = pneg %p102
      %p236 = pneg %p99
      %p237 = pneg %p128
      %p238 = pneg %p125
      %s239 = smul.u32 4, %s18
      %p240 = scmp.lt.s32.totalorder %s239, 7
      %s241 = scalar_select %p240, %s239, 7
      %s242 = smul.addr %s241, 4
      %s243 = scalar_lea.vmem %s4, %s242
      %p244 = pneg %p154
      %p245 = pneg %p151
      %s246 = smul.u32 4, %s18
      %p247 = scmp.lt.s32.totalorder %s246, 7
      %s248 = scalar_select %p247, %s246, 7
      %s249 = smul.addr %s248, 8
      %s250 = scalar_lea.vmem %s5, %s249
      %p251 = pneg %p180
      %p252 = pneg %p177
      %s253 = smul.u32 4, %s18
      %p254 = scmp.lt.s32.totalorder %s253, 7
      %s255 = scalar_select %p254, %s253, 7
      %s256 = smul.addr %s255, 8
      %s257 = scalar_lea.vmem %s6, %s256
      %s258 = smul.u32 4, %s18
      %p259 = scmp.lt.s32.totalorder %s258, 7
      %s260 = scalar_select %p259, %s258, 7
      %s261 = smul.addr %s260, 8
      %s262 = scalar_lea.vmem %s0, %s261
      %s263 = smul.u32 4, %s18
      %s264 = smul.u32 4, %s18
      %p265 = scmp.lt.s32.totalorder %s264, 7
      %s266 = scalar_select %p265, %s264, 7
      %s267 = smul.addr %s266, 4
      %s268 = scalar_lea.vmem %s4, %s267
      %s269 = smul.u32 4, %s18
      %s270 = smul.u32 4, %s18
      %p271 = scmp.lt.s32.totalorder %s270, 7
      %s272 = scalar_select %p271, %s270, 7
      %s273 = smul.addr %s272, 8
      %s274 = scalar_lea.vmem %s5, %s273
      %s275 = smul.u32 4, %s18
      %s276 = smul.u32 4, %s18
      %p277 = scmp.lt.s32.totalorder %s276, 7
      %s278 = scalar_select %p277, %s276, 7
      %s279 = smul.addr %s278, 8
      %s280 = scalar_lea.vmem %s6, %s279
      %s281 = smul.u32 4, %s18
      %v283 = vld [vmem:[%s262] sm:$0xff]
      %v284 = vld [vmem:[%s262 + $0x8] sm:$0xff]
      %v285 = vld [vmem:[%s262 + $0x10] sm:$0xff]
      %v286 = vld [vmem:[%s262 + $0x18] sm:$0xff]
      %v287 = vpack.c.bf16 %v284, %v283
      %v288 = vpack.c.bf16 %v286, %v285
      %v289 = vld [vmem:[%s1] sm:$0xf]
      %v290 = vld [vmem:[%s1 + $0x4] sm:$0xf]
      %v293 = vunpack.c.l.b16 %v289
      %v294 = vunpack.c.l.b16 %v290
      %v295 = vpack.c.b16 %v294, %v293
      %vm297 = vcmask 130048
      %v299 = vsel %vm297, %v287, 0
      %v302 = vsel %vm297, %v288, 0
      %304 = vmatprep.subr.bf16.mxu0 0
      %305 = vmatpush1.bf16.msra.mxu0 0
      %306 = vmatprep.subr.bf16.mxu0 0
      %307 = vmatpush1.bf16.msra.mxu0 0
      %308 = vmatprep.subr.bf16.mxu0 0
      %309 = vmatpush1.bf16.msra.mxu0 0
      %310 = vmatprep.subr.bf16.mxu0 0
      %311 = vmatpush1.bf16.msra.mxu0 0
      %312 = vmatprep.subr.bf16.mxu0 0
      %313 = vmatpush1.bf16.msra.mxu0 0
      %314 = vmatprep.subr.bf16.mxu0 0
      %315 = vmatpush1.bf16.msra.mxu0 0
      %316 = vmatprep.subr.bf16.mxu0 0
      %317 = vmatpush1.bf16.msra.mxu0 0
      %318 = vmatprep.subr.bf16.mxu0 0
      %319 = vmatpush1.bf16.msra.mxu0 %v295
      %320 = vmatprep.subr.bf16.mxu0 0
      %321 = vmatpush2.bf16.msra.mxu0 0
      %322 = vmatprep.subr.bf16.mxu0 0
      %323 = vmatpush2.bf16.msra.mxu0 0
      %324 = vmatprep.subr.bf16.mxu0 0
      %325 = vmatpush2.bf16.msra.mxu0 0
      %326 = vmatprep.subr.bf16.mxu0 0
      %327 = vmatpush2.bf16.msra.mxu0 0
      %328 = vmatprep.subr.bf16.mxu0 0
      %329 = vmatpush2.bf16.msra.mxu0 0
      %330 = vmatprep.subr.bf16.mxu0 0
      %331 = vmatpush2.bf16.msra.mxu0 0
      %332 = vmatprep.subr.bf16.mxu0 0
      %333 = vmatpush2.bf16.msra.mxu0 0
      %334 = vmatprep.subr.bf16.mxu0 0
      %335 = vmatpush2.bf16.msra.mxu0 0
      %336 = vmatprep.mubr.bf16.mxu0 0
      %337 = vmatmul.mubr.bf16.gmra.mxu0 %v299
      %v338 = vpop.f32.mrf.mxu0
      %v339 = vadd.f32 0.0, %v338
      %v340 = vpop.f32.mrf.mxu0
      %v341 = vpop.f32.mrf.mxu0
      %v342 = vadd.f32 0.0, %v341
      %v343 = vpop.f32.mrf.mxu0
      %344 = vmatprep.mubr.bf16.mxu0 0
      %345 = vmatmul.mubr.bf16.gmra.mxu0 %v302
      %v346 = vpop.f32.mrf.mxu0
      %v347 = vadd.f32 0.0, %v346
      %v348 = vpop.f32.mrf.mxu0
      %v349 = vpop.f32.mrf.mxu0
      %v350 = vadd.f32 0.0, %v349
      %v351 = vpop.f32.mrf.mxu0
      %352 = vdwg.mxu0
      %v353 = vpack.c.bf16 %v342, %v339
      %v354 = vpack.c.bf16 %v350, %v347
      %v357 = vunpack.c.l.b16 %v353
      %v358 = vunpack.c.h.b16 %v353
      %v359 = vunpack.c.l.b16 %v354
      %v360 = vunpack.c.h.b16 %v354
      %v361 = vpack.c.b16 %v357, %v357
      %v362 = vpack.c.b16 %v358, %v358
      %v363 = vpack.c.b16 %v359, %v359
      %v364 = vpack.c.b16 %v360, %v360
      %vm369 = vcmask 257024
      %370 = vst.msk [vmem:[%s268] sm:$0xf] %vm369, %v361
      %371 = vst.msk [vmem:[%s268 + $0x4] sm:$0xf] %vm369, %v362
      %372 = vst.msk [vmem:[%s268 + $0x8] sm:$0xf] %vm369, %v363
      %373 = vst.msk [vmem:[%s268 + $0xc] sm:$0xf] %vm369, %v364
      %v374 = vld [vmem:[%s2] sm:$0xf]
      %v375 = vld [vmem:[%s2 + $0x4] sm:$0xf]
      %v378 = vunpack.c.l.b16 %v374
      %v379 = vunpack.c.l.b16 %v375
      %v380 = vpack.c.b16 %v379, %v378
      %382 = vmatprep.subr.bf16.mxu0 0
      %383 = vmatpush1.bf16.msra.mxu0 0
      %384 = vmatprep.subr.bf16.mxu0 0
      %385 = vmatpush1.bf16.msra.mxu0 0
      %386 = vmatprep.subr.bf16.mxu0 0
      %387 = vmatpush1.bf16.msra.mxu0 0
      %388 = vmatprep.subr.bf16.mxu0 0
      %389 = vmatpush1.bf16.msra.mxu0 0
      %390 = vmatprep.subr.bf16.mxu0 0
      %391 = vmatpush1.bf16.msra.mxu0 0
      %392 = vmatprep.subr.bf16.mxu0 0
      %393 = vmatpush1.bf16.msra.mxu0 0
      %394 = vmatprep.subr.bf16.mxu0 0
      %395 = vmatpush1.bf16.msra.mxu0 0
      %396 = vmatprep.subr.bf16.mxu0 0
      %397 = vmatpush1.bf16.msra.mxu0 %v380
      %398 = vmatprep.subr.bf16.mxu0 0
      %399 = vmatpush2.bf16.msra.mxu0 0
      %400 = vmatprep.subr.bf16.mxu0 0
      %401 = vmatpush2.bf16.msra.mxu0 0
      %402 = vmatprep.subr.bf16.mxu0 0
      %403 = vmatpush2.bf16.msra.mxu0 0
      %404 = vmatprep.subr.bf16.mxu0 0
      %405 = vmatpush2.bf16.msra.mxu0 0
      %406 = vmatprep.subr.bf16.mxu0 0
      %407 = vmatpush2.bf16.msra.mxu0 0
      %408 = vmatprep.subr.bf16.mxu0 0
      %409 = vmatpush2.bf16.msra.mxu0 0
      %410 = vmatprep.subr.bf16.mxu0 0
      %411 = vmatpush2.bf16.msra.mxu0 0
      %412 = vmatprep.subr.bf16.mxu0 0
      %413 = vmatpush2.bf16.msra.mxu0 0
      %414 = vmatprep.mubr.bf16.mxu0 0
      %415 = vmatmul.mubr.bf16.gmra.mxu0 %v299
      %v416 = vpop.f32.mrf.mxu0
      %v417 = vadd.f32 0.0, %v416
      %v418 = vpop.f32.mrf.mxu0
      %v419 = vpop.f32.mrf.mxu0
      %v420 = vadd.f32 0.0, %v419
      %v421 = vpop.f32.mrf.mxu0
      %422 = vmatprep.mubr.bf16.mxu0 0
      %423 = vmatmul.mubr.bf16.gmra.mxu0 %v302
      %v424 = vpop.f32.mrf.mxu0
      %v425 = vadd.f32 0.0, %v424
      %v426 = vpop.f32.mrf.mxu0
      %v427 = vpop.f32.mrf.mxu0
      %v428 = vadd.f32 0.0, %v427
      %v429 = vpop.f32.mrf.mxu0
      %430 = vdwg.mxu0
      %vm431 = vcmask 31744
      %432 = vst.msk [vmem:[%s274] sm:$0xff] %vm431, %v417
      %433 = vst.msk [vmem:[%s274 + $0x8] sm:$0xff] %vm431, %v420
      %434 = vst.msk [vmem:[%s274 + $0x10] sm:$0xff] %vm431, %v425
      %435 = vst.msk [vmem:[%s274 + $0x18] sm:$0xff] %vm431, %v428
      %v436 = vld [vmem:[%s3] sm:$0xf]
      %v437 = vld [vmem:[%s3 + $0x4] sm:$0xf]
      %v440 = vunpack.c.l.b16 %v436
      %v441 = vunpack.c.l.b16 %v437
      %v442 = vpack.c.b16 %v441, %v440
      %444 = vmatprep.subr.bf16.mxu0 0
      %445 = vmatpush1.bf16.msra.mxu0 0
      %446 = vmatprep.subr.bf16.mxu0 0
      %447 = vmatpush1.bf16.msra.mxu0 0
      %448 = vmatprep.subr.bf16.mxu0 0
      %449 = vmatpush1.bf16.msra.mxu0 0
      %450 = vmatprep.subr.bf16.mxu0 0
      %451 = vmatpush1.bf16.msra.mxu0 0
      %452 = vmatprep.subr.bf16.mxu0 0
      %453 = vmatpush1.bf16.msra.mxu0 0
      %454 = vmatprep.subr.bf16.mxu0 0
      %455 = vmatpush1.bf16.msra.mxu0 0
      %456 = vmatprep.subr.bf16.mxu0 0
      %457 = vmatpush1.bf16.msra.mxu0 0
      %458 = vmatprep.subr.bf16.mxu0 0
      %459 = vmatpush1.bf16.msra.mxu0 %v442
      %460 = vmatprep.subr.bf16.mxu0 0
      %461 = vmatpush2.bf16.msra.mxu0 0
      %462 = vmatprep.subr.bf16.mxu0 0
      %463 = vmatpush2.bf16.msra.mxu0 0
      %464 = vmatprep.subr.bf16.mxu0 0
      %465 = vmatpush2.bf16.msra.mxu0 0
      %466 = vmatprep.subr.bf16.mxu0 0
      %467 = vmatpush2.bf16.msra.mxu0 0
      %468 = vmatprep.subr.bf16.mxu0 0
      %469 = vmatpush2.bf16.msra.mxu0 0
      %470 = vmatprep.subr.bf16.mxu0 0
      %471 = vmatpush2.bf16.msra.mxu0 0
      %472 = vmatprep.subr.bf16.mxu0 0
      %473 = vmatpush2.bf16.msra.mxu0 0
      %474 = vmatprep.subr.bf16.mxu0 0
      %475 = vmatpush2.bf16.msra.mxu0 0
      %476 = vmatprep.mubr.bf16.mxu0 0
      %477 = vmatmul.mubr.bf16.gmra.mxu0 %v299
      %v478 = vpop.f32.mrf.mxu0
      %v479 = vadd.f32 0.0, %v478
      %v480 = vpop.f32.mrf.mxu0
      %v481 = vpop.f32.mrf.mxu0
      %v482 = vadd.f32 0.0, %v481
      %v483 = vpop.f32.mrf.mxu0
      %484 = vmatprep.mubr.bf16.mxu0 0
      %485 = vmatmul.mubr.bf16.gmra.mxu0 %v302
      %v486 = vpop.f32.mrf.mxu0
      %v487 = vadd.f32 0.0, %v486
      %v488 = vpop.f32.mrf.mxu0
      %v489 = vpop.f32.mrf.mxu0
      %v490 = vadd.f32 0.0, %v489
      %v491 = vpop.f32.mrf.mxu0
      %492 = vdwg.mxu0
      %493 = vst.msk [vmem:[%s280] sm:$0xff] %vm431, %v479
      %494 = vst.msk [vmem:[%s280 + $0x8] sm:$0xff] %vm431, %v482
      %495 = vst.msk [vmem:[%s280 + $0x10] sm:$0xff] %vm431, %v487
      %496 = vst.msk [vmem:[%s280 + $0x18] sm:$0xff] %vm431, %v490
      %s497 = smul.u32 4, %s18
      %p498 = scmp.lt.s32.totalorder %s497, 7
      %s499 = scalar_select %p498, %s497, 7
      %s500 = smul.addr %s499, 4
      %s501 = scalar_lea.vmem %s4, %s500
      %s502 = smul.u32 4, %s18
      %p503 = scmp.lt.s32.totalorder %s502, 7
      %s504 = scalar_select %p503, %s502, 7
      %s505 = smul.addr %s504, 8
      %s506 = scalar_lea.vmem %s5, %s505
      %s507 = smul.u32 4, %s18
      %p508 = scmp.lt.s32.totalorder %s507, 7
      %s509 = scalar_select %p508, %s507, 7
      %s510 = smul.addr %s509, 8
      %s511 = scalar_lea.vmem %s6, %s510
      // Predicated region
      $region37: #{tpu_custom_call.1} parent=35 // pred_check
        %p512 = pneg %p125
      $region38: #{tpu_custom_call.1} parent=35 // pred_check_branch
        %514 = sbr.rel (%p512) target = $region40
      $region39: #{tpu_custom_call.1} parent=35 // pred_region
        %s515 = smul.u32 4, %s18
      $region40: #{tpu_custom_call.1} parent=35 // pred_fallthru
        _
      // Predicated region
      $region41: #{tpu_custom_call.1} parent=35 // pred_check
        %p516 = pneg %p151
      $region42: #{tpu_custom_call.1} parent=35 // pred_check_branch
        %518 = sbr.rel (%p516) target = $region44
      $region43: #{tpu_custom_call.1} parent=35 // pred_region
        %s519 = smul.u32 4, %s18
      $region44: #{tpu_custom_call.1} parent=35 // pred_fallthru
        _
      // Predicated region
      $region45: #{tpu_custom_call.1} parent=35 // pred_check
        %p520 = pneg %p177
      $region46: #{tpu_custom_call.1} parent=35 // pred_check_branch
        %522 = sbr.rel (%p520) target = $region48
      $region47: #{tpu_custom_call.1} parent=35 // pred_region
        %s523 = smul.u32 4, %s18
      $region48: #{tpu_custom_call.1} parent=35 // pred_fallthru
        _
    $region36: #{tpu_custom_call.1} parent=5 // pred_fallthru
      _
    %p524 = scmp.le.s32.totalorder 2, %s13
    // Predicated region
    $region49: #{tpu_custom_call.1} parent=5 // pred_check
      %p525 = pneg %p524
    $region50: #{tpu_custom_call.1} parent=5 // pred_check_branch
      %527 = sbr.rel (%p525) target = $region52
    $region51: #{tpu_custom_call.1} parent=5 // pred_region
      %s528 = ssub.s32 %s13, 2
      // Predicated region
      $region53: #{tpu_custom_call.1} parent=51 // pred_check
        %p529 = pneg %p131
      $region54: #{tpu_custom_call.1} parent=51 // pred_check_branch
        %531 = sbr.rel (%p529) target = $region56
      $region55: #{tpu_custom_call.1} parent=51 // pred_region
        %s532 = smul.u32 4, %s19
        %p533 = scmp.lt.s32.totalorder %s532, 7
        %s534 = scalar_select %p533, %s532, 7
        %s535 = smul.addr %s534, 4
        %s536 = scalar_lea.vmem %s4, %s535
      $region56: #{tpu_custom_call.1} parent=51 // pred_fallthru
        _
      // Predicated region
      $region57: #{tpu_custom_call.1} parent=51 // pred_check
        %p537 = pneg %p157
      $region58: #{tpu_custom_call.1} parent=51 // pred_check_branch
        %539 = sbr.rel (%p537) target = $region60
      $region59: #{tpu_custom_call.1} parent=51 // pred_region
        %s540 = smul.u32 4, %s19
        %p541 = scmp.lt.s32.totalorder %s540, 7
        %s542 = scalar_select %p541, %s540, 7
        %s543 = smul.addr %s542, 8
        %s544 = scalar_lea.vmem %s5, %s543
      $region60: #{tpu_custom_call.1} parent=51 // pred_fallthru
        _
      // Predicated region
      $region61: #{tpu_custom_call.1} parent=51 // pred_check
        %p545 = pneg %p183
      $region62: #{tpu_custom_call.1} parent=51 // pred_check_branch
        %547 = sbr.rel (%p545) target = $region64
      $region63: #{tpu_custom_call.1} parent=51 // pred_region
        %s548 = smul.u32 4, %s19
        %p549 = scmp.lt.s32.totalorder %s548, 7
        %s550 = scalar_select %p549, %s548, 7
        %s551 = smul.addr %s550, 8
        %s552 = scalar_lea.vmem %s6, %s551
      $region64: #{tpu_custom_call.1} parent=51 // pred_fallthru
        _
    $region52: #{tpu_custom_call.1} parent=5 // pred_fallthru
      _
  $region6: #{tpu_custom_call.1} parent=0 // loop_footer
    %s17 = sadd.s32 1, %s13
  $region7: #{tpu_custom_call.1} parent=0 // loop_footer_branch
    %12 = sbr.rel target = $region3
  $region8: #{tpu_custom_call.1} parent=0 // loop_exit
    _

</llo_original>
